<compile_context>
chip_gen: v6e
topology: v6e:2x2x1
jax: 0.10.0
libtpu: 0.0.40
codegen_flags: <defaults>
</compile_context>

<pallas_src>
import jax
import jax.numpy as jnp
import numpy as np
from jax.experimental import pallas as pl
from jax.experimental.pallas import tpu as pltpu


def _make_kernel(layer_specs, nb, L, out_dtype):
    """layer_specs: tuple of (kernel_size, apply_relu) per conv layer."""
    n_layers = len(layer_specs)
    W = nb * L  # block lane width (static)

    def kernel(*refs):
        x_ref = refs[0]
        w_refs = refs[1:1 + n_layers]
        b_refs = refs[1 + n_layers:1 + 2 * n_layers]
        o_ref = refs[1 + 2 * n_layers]

        h = x_ref[...].astype(jnp.float32)                      # (C, Nb*L)

        # Lane position within each sample (static block geometry).
        pos = jax.lax.broadcasted_iota(jnp.int32, (1, W), 1) % L

        def tap(v, d):
            """v[:, l] -> v[:, l + d] circular *within each sample* of width L."""
            if d == 0:
                return v
            main = pltpu.roll(v, shift=(-d) % W, axis=1)        # whole-block roll
            if nb == 1:
                return main                                     # block == sample
            # Fix the nb lanes per shift that wrapped across a sample boundary.
            if d > 0:
                alt = pltpu.roll(v, shift=(L - d) % W, axis=1)
                m = pos >= (L - d)
            else:
                alt = pltpu.roll(v, shift=(-d - L) % W, axis=1)
                m = pos < (-d)
            return jnp.where(jnp.broadcast_to(m, main.shape), alt, main)

        for (ksize, relu), w_ref, b_ref in zip(layer_specs, w_refs, b_refs):
            if ksize == 1:
                rhs = h                                         # 1x1 conv: plain matmul
            else:
                # k=3 circular conv: stack tap-shifted copies along the channel
                # (sublane) axis -> single matmul per layer against (C_out, K*C_in).
                left = ksize // 2
                rhs = jnp.concatenate([tap(h, k - left) for k in range(ksize)],
                                      axis=0)                   # (K*C, Nb*L)
            y = jnp.dot(w_ref[...].astype(jnp.float32), rhs,
                        preferred_element_type=jnp.float32)     # (C_out, Nb*L)
            y = y + b_ref[...].astype(jnp.float32)              # bias (C_out, 1)
            if relu:
                y = jnp.maximum(y, 0.0)
            h = y
        o_ref[...] = h.astype(out_dtype)

    return kernel


def _pack_weight(w):
    """(C_out, C_in, K) conv1d weight -> (C_out, K*C_in), tap-major,
    matching the in-kernel [tap(-1); tap(0); tap(+1)] channel stacking."""
    co, ci, k = w.shape
    return jnp.transpose(w, (0, 2, 1)).reshape(co, k * ci)


def _choose_nb(N, L):
    # Prefer a grid length that is a multiple of 2 (v7x has 2 TensorCores)
    # while keeping the block lane width a multiple of 128.
    if N % 2 == 0 and ((N // 2) * L) % 128 == 0:
        return N // 2
    return N


def tiny_network_forward(x, layers):
    """x: (N, C_in, L).  layers: list of (w (C_out, C_in, K), b (C_out,), relu)."""
    N, C_in, L = x.shape
    max_k = max(int(w.shape[-1]) for (w, _, _) in layers)
    assert L >= max_k, "circular conv via lane rotation assumes L >= kernel_size"

    nb = _choose_nb(N, L)
    assert N % nb == 0
    grid = (N // nb,)

    layer_specs = tuple((int(w.shape[-1]), bool(relu)) for (w, _, relu) in layers)
    weights = [_pack_weight(jnp.asarray(w)) for (w, _, _) in layers]
    biases = [jnp.asarray(b).reshape(-1, 1) for (_, b, _) in layers]
    C_out = weights[-1].shape[0]

    # Lane-dense layout: (N, C, L) -> (C, N*L); sample n occupies lanes [n*L, (n+1)*L).
    x2 = jnp.transpose(x, (1, 0, 2)).reshape(C_in, N * L)

    in_specs = [pl.BlockSpec((C_in, nb * L), lambda b: (0, b))]
    for w2 in weights:
        in_specs.append(pl.BlockSpec(w2.shape, lambda b: (0, 0)))
    for b2 in biases:
        in_specs.append(pl.BlockSpec(b2.shape, lambda b: (0, 0)))

    out2 = pl.pallas_call(
        _make_kernel(layer_specs, nb, L, x.dtype),
        out_shape=jax.ShapeDtypeStruct((C_out, N * L), x.dtype),
        grid=grid,
        in_specs=in_specs,
        out_specs=pl.BlockSpec((C_out, nb * L), lambda b: (0, b)),
        compiler_params=pltpu.CompilerParams(dimension_semantics=("parallel",)),
    )(x2, *weights, *biases)

    return jnp.transpose(out2.reshape(C_out, N, L), (1, 0, 2))   # (N, C_out, L)


def _ref_forward(xv, layers):
    """Plain-JAX reference: same circular-'same' conv stack (eval semantics)."""
    h = xv
    for (w, b, relu) in layers:
        K = w.shape[-1]
        left, right = K // 2, (K - 1) // 2
        Lv = h.shape[-1]
        hp = (jnp.concatenate([h[..., Lv - left:], h, h[..., :right]], axis=-1)
              if K > 1 else h)
        win = jnp.stack([hp[..., k:k + Lv] for k in range(K)], axis=-1)  # (N,C,L,K)
        h = jnp.einsum('nclk,ock->nol', win, w,
                       precision=jax.lax.Precision.HIGHEST) + b[None, :, None]
        if relu:
            h = jnp.maximum(h, 0.0)
    return h


if __name__ == "__main__":
    # TinyNetwork(n_filters_ks3=[16,16], n_filters_ks1=[[8],[16],[8]],
    #             n_channels_in=4, n_channels_out=4, padding_mode='circular')
    N, L = 4, 128
    n_channels_in, n_channels_out = 4, 4
    n_filters_ks3 = [16, 16]
    n_filters_ks1 = [[8], [16], [8]]

    # Build the layer sequence exactly as TinyNetwork.forward visits it.
    layer_dims = []                       # (C_in, C_out, K, relu)
    c = n_channels_in
    for j in n_filters_ks1[0]:
        layer_dims.append((c, j, 1, True)); c = j
    for i, c3 in enumerate(n_filters_ks3):
        layer_dims.append((c, c3, 3, True)); c = c3
        for j in n_filters_ks1[i + 1]:
            layer_dims.append((c, j, 1, True)); c = j
    layer_dims.append((c, n_channels_out, 1, False))   # self.final (no relu)

    key = jax.random.PRNGKey(0)
    keys = jax.random.split(key, 2 * len(layer_dims) + 1)
    x = jax.random.normal(keys[0], (N, n_channels_in, L), jnp.float32)

    layers = []
    for li, (ci, co, k, relu) in enumerate(layer_dims):
        w = (0.5 / np.sqrt(ci * k)) * jax.random.normal(
            keys[1 + 2 * li], (co, ci, k), jnp.float32)
        b = 0.1 * jax.random.normal(keys[2 + 2 * li], (co,), jnp.float32)
        layers.append((w, b, relu))

    out = jax.block_until_ready(tiny_network_forward(x, layers))

    ref = _ref_forward(x, layers)
    err = float(np.max(np.abs(np.asarray(out) - np.asarray(ref))))
    assert np.allclose(np.asarray(out), np.asarray(ref), rtol=5e-3, atol=5e-3), err
    print("KERNEL_OK")
</pallas_src>

<mosaic_0001>
module attributes {stable_mosaic.version = 11 : i64} {
  func.func @kernel(%arg0: i32, %arg1: memref<4x256xf32, #tpu.memory_space<vmem>>, %arg2: memref<8x4xf32, #tpu.memory_space<vmem>>, %arg3: memref<16x24xf32, #tpu.memory_space<vmem>>, %arg4: memref<16x16xf32, #tpu.memory_space<vmem>>, %arg5: memref<16x48xf32, #tpu.memory_space<vmem>>, %arg6: memref<8x16xf32, #tpu.memory_space<vmem>>, %arg7: memref<4x8xf32, #tpu.memory_space<vmem>>, %arg8: memref<8x1xf32, #tpu.memory_space<vmem>>, %arg9: memref<16x1xf32, #tpu.memory_space<vmem>>, %arg10: memref<16x1xf32, #tpu.memory_space<vmem>>, %arg11: memref<16x1xf32, #tpu.memory_space<vmem>>, %arg12: memref<8x1xf32, #tpu.memory_space<vmem>>, %arg13: memref<4x1xf32, #tpu.memory_space<vmem>>, %arg14: memref<4x256xf32, #tpu.memory_space<vmem>>) attributes {dimension_semantics = [#tpu.dimension_semantics<parallel>], iteration_bounds = array<i64: 2>, scalar_prefetch = 0 : i64, scratch_operands = 0 : i64, tpu.core_type = #tpu.core_type<tc>, window_params = [{transform_indices = @transform_0, window_bounds = array<i64: 4, 256>}, {pipeline_mode = #tpu.pipeline_mode<synchronous>, transform_indices = @transform_1, window_bounds = array<i64: 8, 4>}, {pipeline_mode = #tpu.pipeline_mode<synchronous>, transform_indices = @transform_2, window_bounds = array<i64: 16, 24>}, {pipeline_mode = #tpu.pipeline_mode<synchronous>, transform_indices = @transform_3, window_bounds = array<i64: 16, 16>}, {pipeline_mode = #tpu.pipeline_mode<synchronous>, transform_indices = @transform_4, window_bounds = array<i64: 16, 48>}, {pipeline_mode = #tpu.pipeline_mode<synchronous>, transform_indices = @transform_5, window_bounds = array<i64: 8, 16>}, {pipeline_mode = #tpu.pipeline_mode<synchronous>, transform_indices = @transform_6, window_bounds = array<i64: 4, 8>}, {pipeline_mode = #tpu.pipeline_mode<synchronous>, transform_indices = @transform_7, window_bounds = array<i64: 8, 1>}, {pipeline_mode = #tpu.pipeline_mode<synchronous>, transform_indices = @transform_8, window_bounds = array<i64: 16, 1>}, {pipeline_mode = #tpu.pipeline_mode<synchronous>, transform_indices = @transform_9, window_bounds = array<i64: 16, 1>}, {pipeline_mode = #tpu.pipeline_mode<synchronous>, transform_indices = @transform_10, window_bounds = array<i64: 16, 1>}, {pipeline_mode = #tpu.pipeline_mode<synchronous>, transform_indices = @transform_11, window_bounds = array<i64: 8, 1>}, {pipeline_mode = #tpu.pipeline_mode<synchronous>, transform_indices = @transform_12, window_bounds = array<i64: 4, 1>}, {transform_indices = @transform_13, window_bounds = array<i64: 4, 256>}]} {
    %c0 = arith.constant 0 : index
    %c0_0 = arith.constant 0 : index
    %0 = vector.load %arg1[%c0, %c0_0] : memref<4x256xf32, #tpu.memory_space<vmem>>, vector<4x256xf32>
    %1 = tpu.iota {dimensions = array<i32: 1>} : vector<1x256xi32>
    %c128_i32 = arith.constant 128 : i32
    %c0_i32 = arith.constant 0 : i32
    %2 = arith.cmpi eq, %c128_i32, %c0_i32 : i32
    %c1_i32 = arith.constant 1 : i32
    %3 = arith.select %2, %c1_i32, %c128_i32 : i32
    %4 = vector.broadcast %3 : i32 to vector<1x256xi32>
    %5 = arith.remsi %1, %4 : vector<1x256xi32>
    %c0_i32_1 = arith.constant 0 : i32
    %6 = vector.broadcast %c0_i32_1 : i32 to vector<1x256xi32>
    %7 = arith.cmpi ne, %5, %6 : vector<1x256xi32>
    %c0_i32_2 = arith.constant 0 : i32
    %8 = vector.broadcast %c0_i32_2 : i32 to vector<1x256xi32>
    %9 = arith.cmpi slt, %5, %8 : vector<1x256xi32>
    %c0_i32_3 = arith.constant 0 : i32
    %10 = arith.cmpi slt, %3, %c0_i32_3 : i32
    %11 = vector.broadcast %10 : i1 to vector<1x256xi1>
    %12 = vector.broadcast %11 : vector<1x256xi1> to vector<1x256xi1>
    %13 = arith.xori %9, %12 : vector<1x256xi1>
    %14 = arith.andi %13, %7 : vector<1x256xi1>
    %15 = vector.broadcast %3 : i32 to vector<1x256xi32>
    %16 = arith.addi %5, %15 : vector<1x256xi32>
    %17 = arith.select %14, %16, %5 : vector<1x256xi1>, vector<1x256xi32>
    %c0_4 = arith.constant 0 : index
    %c0_5 = arith.constant 0 : index
    %18 = vector.load %arg2[%c0_4, %c0_5] : memref<8x4xf32, #tpu.memory_space<vmem>>, vector<8x4xf32>
    %cst = arith.constant dense<0.000000e+00> : vector<8x256xf32>
    %19 = tpu.matmul %18, %0, %cst {dimension_numbers = #tpu.dot_dimension_numbers<[1], [0], [0], [1], [0, 0, 1, 1], [], []>} : vector<8x4xf32>, vector<4x256xf32>, vector<8x256xf32> -> vector<8x256xf32>
    %c0_6 = arith.constant 0 : index
    %c0_7 = arith.constant 0 : index
    %20 = vector.load %arg8[%c0_6, %c0_7] : memref<8x1xf32, #tpu.memory_space<vmem>>, vector<8x1xf32>
    %21 = vector.broadcast %20 : vector<8x1xf32> to vector<8x256xf32>
    %22 = arith.addf %19, %21 : vector<8x256xf32>
    %cst_8 = arith.constant 0.000000e+00 : f32
    %23 = vector.broadcast %cst_8 : f32 to vector<8x256xf32>
    %24 = arith.maximumf %22, %23 : vector<8x256xf32>
    %c1_i32_9 = arith.constant 1 : i32
    %25 = tpu.dynamic_rotate %24 by %c1_i32_9 dim 1 : vector<8x256xf32>, i32 -> vector<8x256xf32>
    %c129_i32 = arith.constant 129 : i32
    %26 = tpu.dynamic_rotate %24 by %c129_i32 dim 1 : vector<8x256xf32>, i32 -> vector<8x256xf32>
    %c1_i32_10 = arith.constant 1 : i32
    %27 = vector.broadcast %c1_i32_10 : i32 to vector<1x256xi32>
    %28 = arith.cmpi slt, %17, %27 : vector<1x256xi32>
    %29 = vector.shape_cast %28 : vector<1x256xi1> to vector<1x256xi1>
    %30 = vector.broadcast %29 : vector<1x256xi1> to vector<8x256xi1>
    %31 = arith.select %30, %26, %25 : vector<8x256xi1>, vector<8x256xf32>
    %c255_i32 = arith.constant 255 : i32
    %32 = tpu.dynamic_rotate %24 by %c255_i32 dim 1 : vector<8x256xf32>, i32 -> vector<8x256xf32>
    %c127_i32 = arith.constant 127 : i32
    %33 = tpu.dynamic_rotate %24 by %c127_i32 dim 1 : vector<8x256xf32>, i32 -> vector<8x256xf32>
    %c127_i32_11 = arith.constant 127 : i32
    %34 = vector.broadcast %c127_i32_11 : i32 to vector<1x256xi32>
    %35 = arith.cmpi sge, %17, %34 : vector<1x256xi32>
    %36 = vector.shape_cast %35 : vector<1x256xi1> to vector<1x256xi1>
    %37 = vector.broadcast %36 : vector<1x256xi1> to vector<8x256xi1>
    %38 = arith.select %37, %33, %32 : vector<8x256xi1>, vector<8x256xf32>
    %39 = tpu.concatenate %31, %24, %38 in 0 : vector<8x256xf32>, vector<8x256xf32>, vector<8x256xf32> -> vector<24x256xf32>
    %c0_12 = arith.constant 0 : index
    %c0_13 = arith.constant 0 : index
    %40 = vector.load %arg3[%c0_12, %c0_13] : memref<16x24xf32, #tpu.memory_space<vmem>>, vector<16x24xf32>
    %cst_14 = arith.constant dense<0.000000e+00> : vector<16x256xf32>
    %41 = tpu.matmul %40, %39, %cst_14 {dimension_numbers = #tpu.dot_dimension_numbers<[1], [0], [0], [1], [0, 0, 1, 1], [], []>} : vector<16x24xf32>, vector<24x256xf32>, vector<16x256xf32> -> vector<16x256xf32>
    %c0_15 = arith.constant 0 : index
    %c0_16 = arith.constant 0 : index
    %42 = vector.load %arg9[%c0_15, %c0_16] : memref<16x1xf32, #tpu.memory_space<vmem>>, vector<16x1xf32>
    %43 = vector.broadcast %42 : vector<16x1xf32> to vector<16x256xf32>
    %44 = arith.addf %41, %43 : vector<16x256xf32>
    %cst_17 = arith.constant 0.000000e+00 : f32
    %45 = vector.broadcast %cst_17 : f32 to vector<16x256xf32>
    %46 = arith.maximumf %44, %45 : vector<16x256xf32>
    %c0_18 = arith.constant 0 : index
    %c0_19 = arith.constant 0 : index
    %47 = vector.load %arg4[%c0_18, %c0_19] : memref<16x16xf32, #tpu.memory_space<vmem>>, vector<16x16xf32>
    %cst_20 = arith.constant dense<0.000000e+00> : vector<16x256xf32>
    %48 = tpu.matmul %47, %46, %cst_20 {dimension_numbers = #tpu.dot_dimension_numbers<[1], [0], [0], [1], [0, 0, 1, 1], [], []>} : vector<16x16xf32>, vector<16x256xf32>, vector<16x256xf32> -> vector<16x256xf32>
    %c0_21 = arith.constant 0 : index
    %c0_22 = arith.constant 0 : index
    %49 = vector.load %arg10[%c0_21, %c0_22] : memref<16x1xf32, #tpu.memory_space<vmem>>, vector<16x1xf32>
    %50 = vector.broadcast %49 : vector<16x1xf32> to vector<16x256xf32>
    %51 = arith.addf %48, %50 : vector<16x256xf32>
    %cst_23 = arith.constant 0.000000e+00 : f32
    %52 = vector.broadcast %cst_23 : f32 to vector<16x256xf32>
    %53 = arith.maximumf %51, %52 : vector<16x256xf32>
    %c1_i32_24 = arith.constant 1 : i32
    %54 = tpu.dynamic_rotate %53 by %c1_i32_24 dim 1 : vector<16x256xf32>, i32 -> vector<16x256xf32>
    %c129_i32_25 = arith.constant 129 : i32
    %55 = tpu.dynamic_rotate %53 by %c129_i32_25 dim 1 : vector<16x256xf32>, i32 -> vector<16x256xf32>
    %c1_i32_26 = arith.constant 1 : i32
    %56 = vector.broadcast %c1_i32_26 : i32 to vector<1x256xi32>
    %57 = arith.cmpi slt, %17, %56 : vector<1x256xi32>
    %58 = vector.shape_cast %57 : vector<1x256xi1> to vector<1x256xi1>
    %59 = vector.broadcast %58 : vector<1x256xi1> to vector<16x256xi1>
    %60 = arith.select %59, %55, %54 : vector<16x256xi1>, vector<16x256xf32>
    %c255_i32_27 = arith.constant 255 : i32
    %61 = tpu.dynamic_rotate %53 by %c255_i32_27 dim 1 : vector<16x256xf32>, i32 -> vector<16x256xf32>
    %c127_i32_28 = arith.constant 127 : i32
    %62 = tpu.dynamic_rotate %53 by %c127_i32_28 dim 1 : vector<16x256xf32>, i32 -> vector<16x256xf32>
    %c127_i32_29 = arith.constant 127 : i32
    %63 = vector.broadcast %c127_i32_29 : i32 to vector<1x256xi32>
    %64 = arith.cmpi sge, %17, %63 : vector<1x256xi32>
    %65 = vector.shape_cast %64 : vector<1x256xi1> to vector<1x256xi1>
    %66 = vector.broadcast %65 : vector<1x256xi1> to vector<16x256xi1>
    %67 = arith.select %66, %62, %61 : vector<16x256xi1>, vector<16x256xf32>
    %68 = tpu.concatenate %60, %53, %67 in 0 : vector<16x256xf32>, vector<16x256xf32>, vector<16x256xf32> -> vector<48x256xf32>
    %c0_30 = arith.constant 0 : index
    %c0_31 = arith.constant 0 : index
    %69 = vector.load %arg5[%c0_30, %c0_31] : memref<16x48xf32, #tpu.memory_space<vmem>>, vector<16x48xf32>
    %cst_32 = arith.constant dense<0.000000e+00> : vector<16x256xf32>
    %70 = tpu.matmul %69, %68, %cst_32 {dimension_numbers = #tpu.dot_dimension_numbers<[1], [0], [0], [1], [0, 0, 1, 1], [], []>} : vector<16x48xf32>, vector<48x256xf32>, vector<16x256xf32> -> vector<16x256xf32>
    %c0_33 = arith.constant 0 : index
    %c0_34 = arith.constant 0 : index
    %71 = vector.load %arg11[%c0_33, %c0_34] : memref<16x1xf32, #tpu.memory_space<vmem>>, vector<16x1xf32>
    %72 = vector.broadcast %71 : vector<16x1xf32> to vector<16x256xf32>
    %73 = arith.addf %70, %72 : vector<16x256xf32>
    %cst_35 = arith.constant 0.000000e+00 : f32
    %74 = vector.broadcast %cst_35 : f32 to vector<16x256xf32>
    %75 = arith.maximumf %73, %74 : vector<16x256xf32>
    %c0_36 = arith.constant 0 : index
    %c0_37 = arith.constant 0 : index
    %76 = vector.load %arg6[%c0_36, %c0_37] : memref<8x16xf32, #tpu.memory_space<vmem>>, vector<8x16xf32>
    %cst_38 = arith.constant dense<0.000000e+00> : vector<8x256xf32>
    %77 = tpu.matmul %76, %75, %cst_38 {dimension_numbers = #tpu.dot_dimension_numbers<[1], [0], [0], [1], [0, 0, 1, 1], [], []>} : vector<8x16xf32>, vector<16x256xf32>, vector<8x256xf32> -> vector<8x256xf32>
    %c0_39 = arith.constant 0 : index
    %c0_40 = arith.constant 0 : index
    %78 = vector.load %arg12[%c0_39, %c0_40] : memref<8x1xf32, #tpu.memory_space<vmem>>, vector<8x1xf32>
    %79 = vector.broadcast %78 : vector<8x1xf32> to vector<8x256xf32>
    %80 = arith.addf %77, %79 : vector<8x256xf32>
    %cst_41 = arith.constant 0.000000e+00 : f32
    %81 = vector.broadcast %cst_41 : f32 to vector<8x256xf32>
    %82 = arith.maximumf %80, %81 : vector<8x256xf32>
    %c0_42 = arith.constant 0 : index
    %c0_43 = arith.constant 0 : index
    %83 = vector.load %arg7[%c0_42, %c0_43] : memref<4x8xf32, #tpu.memory_space<vmem>>, vector<4x8xf32>
    %cst_44 = arith.constant dense<0.000000e+00> : vector<4x256xf32>
    %84 = tpu.matmul %83, %82, %cst_44 {dimension_numbers = #tpu.dot_dimension_numbers<[1], [0], [0], [1], [0, 0, 1, 1], [], []>} : vector<4x8xf32>, vector<8x256xf32>, vector<4x256xf32> -> vector<4x256xf32>
    %c0_45 = arith.constant 0 : index
    %c0_46 = arith.constant 0 : index
    %85 = vector.load %arg13[%c0_45, %c0_46] : memref<4x1xf32, #tpu.memory_space<vmem>>, vector<4x1xf32>
    %86 = vector.broadcast %85 : vector<4x1xf32> to vector<4x256xf32>
    %87 = arith.addf %84, %86 : vector<4x256xf32>
    %c0_47 = arith.constant 0 : index
    %c0_48 = arith.constant 0 : index
    %88 = vector.load %arg14[%c0_47, %c0_48] : memref<4x256xf32, #tpu.memory_space<vmem>>, vector<4x256xf32>
    tpu.vector_store %arg14[%c0_47, %c0_48], %87 {strides = array<i32>} : memref<4x256xf32, #tpu.memory_space<vmem>>, vector<4x256xf32>,
    return
  }
  func.func @transform_0(%arg0: i32) -> (i32, i32) {
    %c0_i32 = arith.constant 0 : i32
    %c0_i32_0 = arith.constant 0 : i32
    return %c0_i32, %arg0 : i32, i32
  }
  func.func @transform_1(%arg0: i32) -> (i32, i32) {
    %c0_i32 = arith.constant 0 : i32
    %c0_i32_0 = arith.constant 0 : i32
    %c0_i32_1 = arith.constant 0 : i32
    return %c0_i32, %c0_i32_0 : i32, i32
  }
  func.func @transform_2(%arg0: i32) -> (i32, i32) {
    %c0_i32 = arith.constant 0 : i32
    %c0_i32_0 = arith.constant 0 : i32
    %c0_i32_1 = arith.constant 0 : i32
    return %c0_i32, %c0_i32_0 : i32, i32
  }
  func.func @transform_3(%arg0: i32) -> (i32, i32) {
    %c0_i32 = arith.constant 0 : i32
    %c0_i32_0 = arith.constant 0 : i32
    %c0_i32_1 = arith.constant 0 : i32
    return %c0_i32, %c0_i32_0 : i32, i32
  }
  func.func @transform_4(%arg0: i32) -> (i32, i32) {
    %c0_i32 = arith.constant 0 : i32
    %c0_i32_0 = arith.constant 0 : i32
    %c0_i32_1 = arith.constant 0 : i32
    return %c0_i32, %c0_i32_0 : i32, i32
  }
  func.func @transform_5(%arg0: i32) -> (i32, i32) {
    %c0_i32 = arith.constant 0 : i32
    %c0_i32_0 = arith.constant 0 : i32
    %c0_i32_1 = arith.constant 0 : i32
    return %c0_i32, %c0_i32_0 : i32, i32
  }
  func.func @transform_6(%arg0: i32) -> (i32, i32) {
    %c0_i32 = arith.constant 0 : i32
    %c0_i32_0 = arith.constant 0 : i32
    %c0_i32_1 = arith.constant 0 : i32
    return %c0_i32, %c0_i32_0 : i32, i32
  }
  func.func @transform_7(%arg0: i32) -> (i32, i32) {
    %c0_i32 = arith.constant 0 : i32
    %c0_i32_0 = arith.constant 0 : i32
    %c0_i32_1 = arith.constant 0 : i32
    return %c0_i32, %c0_i32_0 : i32, i32
  }
  func.func @transform_8(%arg0: i32) -> (i32, i32) {
    %c0_i32 = arith.constant 0 : i32
    %c0_i32_0 = arith.constant 0 : i32
    %c0_i32_1 = arith.constant 0 : i32
    return %c0_i32, %c0_i32_0 : i32, i32
  }
  func.func @transform_9(%arg0: i32) -> (i32, i32) {
    %c0_i32 = arith.constant 0 : i32
    %c0_i32_0 = arith.constant 0 : i32
    %c0_i32_1 = arith.constant 0 : i32
    return %c0_i32, %c0_i32_0 : i32, i32
  }
  func.func @transform_10(%arg0: i32) -> (i32, i32) {
    %c0_i32 = arith.constant 0 : i32
    %c0_i32_0 = arith.constant 0 : i32
    %c0_i32_1 = arith.constant 0 : i32
    return %c0_i32, %c0_i32_0 : i32, i32
  }
  func.func @transform_11(%arg0: i32) -> (i32, i32) {
    %c0_i32 = arith.constant 0 : i32
    %c0_i32_0 = arith.constant 0 : i32
    %c0_i32_1 = arith.constant 0 : i32
    return %c0_i32, %c0_i32_0 : i32, i32
  }
  func.func @transform_12(%arg0: i32) -> (i32, i32) {
    %c0_i32 = arith.constant 0 : i32
    %c0_i32_0 = arith.constant 0 : i32
    %c0_i32_1 = arith.constant 0 : i32
    return %c0_i32, %c0_i32_0 : i32, i32
  }
  func.func @transform_13(%arg0: i32) -> (i32, i32) {
    %c0_i32 = arith.constant 0 : i32
    %c0_i32_0 = arith.constant 0 : i32
    return %c0_i32, %arg0 : i32, i32
  }
}

</mosaic_0001>

<llo_original>
// kernel: tpu_custom_call.1
$region0: #{tpu_custom_call.1}
  #allocation0 [shape = 'u32[]', space=smem, size = 0x4, offset = 0x4, fixed_abs, tag = 'smem constant byte address 0x4 - core index']
  #allocation1 [shape = 'u32[144,128]{1,0:T(1,128)}', space=vmem, size = 0x12000, scoped, tag = 'internal scratch']
  %s0 = inlined_call_operand.vmem [shape: f32[4,512], index: 0, kind: input, shape index: {}]
  %s1 = inlined_call_operand.vmem [shape: f32[8,4], index: 1, kind: input, shape index: {}]
  %s2 = inlined_call_operand.vmem [shape: f32[16,24], index: 2, kind: input, shape index: {}]
  %s3 = inlined_call_operand.vmem [shape: f32[16,16], index: 3, kind: input, shape index: {}]
  %s4 = inlined_call_operand.vmem [shape: f32[16,48], index: 4, kind: input, shape index: {}]
  %s5 = inlined_call_operand.vmem [shape: f32[8,16], index: 5, kind: input, shape index: {}]
  %s6 = inlined_call_operand.vmem [shape: f32[4,8], index: 6, kind: input, shape index: {}]
  %s7 = inlined_call_operand.vmem [shape: f32[8,1], index: 7, kind: input, shape index: {}]
  %s8 = inlined_call_operand.vmem [shape: f32[16,1], index: 8, kind: input, shape index: {}]
  %s9 = inlined_call_operand.vmem [shape: f32[16,1], index: 9, kind: input, shape index: {}]
  %s10 = inlined_call_operand.vmem [shape: f32[16,1], index: 10, kind: input, shape index: {}]
  %s11 = inlined_call_operand.vmem [shape: f32[8,1], index: 11, kind: input, shape index: {}]
  %s12 = inlined_call_operand.vmem [shape: f32[4,1], index: 12, kind: input, shape index: {}]
  %s13 = inlined_call_operand.hbm [shape: f32[4,512], index: 13, kind: output, shape index: {}]
  %s14 = sld [smem:[#allocation0]]
  $region85: #{tpu_custom_call.1} parent=0
    _
  %s16 = ssub.s32 1, %s14
  %s17 = scalar_select 0, %s16, %s14
  $region1: #{tpu_custom_call.1} parent=0
    #allocation2 [shape = 'u8[8192]{0}', space=vmem, size = 0x2000, scoped, tag = 'output window, operand 0']
    #allocation3 [shape = 's32[2]{0}', space=sflag, size = 0x8, scoped, tag = 'scoped memory for tpu_custom_call.1']
    %18 = vsyncpa [#allocation3], 0
    %s19 = scalar_lea.sflag [#allocation3], 1
    %20 = vsyncpa %s19, 0
    loop: start=0, step=1, limit=4
    $region2: #{tpu_custom_call.1} parent=1 // loop_pre_header
      _
    $region3: #{tpu_custom_call.1} parent=1 // loop_header
      %s22 = sphi 0, %s26
      %p23 = scmp.ge.s32.totalorder %s22, 4
      %s32 = sphi 0, %s34
      %s35 = sphi 0, %s32
      %s36 = sphi 0, %s35
      %s52 = sphi 0, %s36
      %s56 = sphi 0, %s56
      %s58 = sphi 0, %s56
      %s59 = sphi 0, %s58
      %s73 = sphi 0, %s59
      %s77 = sphi 0, %s77
      %s79 = sphi 0, %s77
      %s80 = sphi 0, %s79
      %s94 = sphi 0, %s80
      %s98 = sphi 0, %s98
      %s100 = sphi 0, %s98
      %s101 = sphi 0, %s100
      %s115 = sphi 0, %s101
      %s119 = sphi 0, %s119
      %s121 = sphi 0, %s119
      %s122 = sphi 0, %s121
      %s136 = sphi 0, %s122
      %s140 = sphi 0, %s140
      %s142 = sphi 0, %s140
      %s143 = sphi 0, %s142
      %s157 = sphi 0, %s143
      %s161 = sphi 0, %s161
      %s163 = sphi 0, %s161
      %s164 = sphi 0, %s163
      %s178 = sphi 0, %s164
      %s182 = sphi 0, %s182
      %s184 = sphi 0, %s182
      %s185 = sphi 0, %s184
      %s199 = sphi 0, %s185
      %s203 = sphi 0, %s203
      %s205 = sphi 0, %s203
      %s206 = sphi 0, %s205
      %s220 = sphi 0, %s206
      %s224 = sphi 0, %s224
      %s226 = sphi 0, %s224
      %s227 = sphi 0, %s226
      %s241 = sphi 0, %s227
      %s245 = sphi 0, %s245
      %s247 = sphi 0, %s245
      %s248 = sphi 0, %s247
      %s262 = sphi 0, %s248
      %s266 = sphi 0, %s266
      %s268 = sphi 0, %s266
      %s269 = sphi 0, %s268
      %s283 = sphi 0, %s269
      %s287 = sphi 0, %s287
      %s289 = sphi 0, %s287
      %s290 = sphi 0, %s289
      %s304 = sphi 0, %s290
      %s310 = sphi 0, %s312
      %s313 = sphi 0, %s310
      %s314 = sphi 0, %s313
      %s330 = sphi 0, %s314
    $region4: #{tpu_custom_call.1} parent=1 // loop_header_branch
      %25 = sbr.rel (%p23) target = $region8
    $region5: #{tpu_custom_call.1} parent=1 // loop_body
      %s27 = ssub.s32 %s22, 1
      %s28 = ssub.s32 %s22, 2
      %s29 = sadd.s32 %s22, 1
      %s30 = ssub.s32 %s22, %s29
      %p31 = scmp.eq.s32.totalorder %s30, 0
      %s33 = sadd.s32 %s32, 1
      %s34 = scalar_select %p31, %s32, %s33
      %p37 = pneg %p31
      %p38 = scmp.eq.s32.totalorder %s22, 1
      %p39 = por %p37, %p38
      %p40 = scmp.ne.s32.totalorder %s32, %s35
      %p41 = scmp.eq.s32.totalorder %s22, 0
      %p42 = por %p40, %p41
      %p43 = scmp.ne.s32.totalorder %s32, %s35
      %p44 = scmp.eq.s32.totalorder %s27, 1
      %p45 = por %p43, %p44
      %p46 = scmp.ne.s32.totalorder %s35, %s36
      %p47 = scmp.eq.s32.totalorder %s27, 0
      %p48 = por %p46, %p47
      %p49 = scmp.ne.s32.totalorder %s35, %s36
      %p50 = scmp.eq.s32.totalorder %s28, 1
      %p51 = por %p49, %p50
      %p53 = scmp.ne.s32.totalorder %s36, %s52
      %p54 = scmp.eq.s32.totalorder %s28, 0
      %p55 = por %p53, %p54
      %s57 = sadd.s32 %s56, 1
      %p60 = scmp.eq.s32.totalorder %s22, 1
      %p61 = scmp.ne.s32.totalorder %s56, %s58
      %p62 = scmp.eq.s32.totalorder %s22, 0
      %p63 = por %p61, %p62
      %p64 = scmp.ne.s32.totalorder %s56, %s58
      %p65 = scmp.eq.s32.totalorder %s27, 1
      %p66 = por %p64, %p65
      %p67 = scmp.ne.s32.totalorder %s58, %s59
      %p68 = scmp.eq.s32.totalorder %s27, 0
      %p69 = por %p67, %p68
      %p70 = scmp.ne.s32.totalorder %s58, %s59
      %p71 = scmp.eq.s32.totalorder %s28, 1
      %p72 = por %p70, %p71
      %p74 = scmp.ne.s32.totalorder %s59, %s73
      %p75 = scmp.eq.s32.totalorder %s28, 0
      %p76 = por %p74, %p75
      %s78 = sadd.s32 %s77, 1
      %p81 = scmp.eq.s32.totalorder %s22, 1
      %p82 = scmp.ne.s32.totalorder %s77, %s79
      %p83 = scmp.eq.s32.totalorder %s22, 0
      %p84 = por %p82, %p83
      %p85 = scmp.ne.s32.totalorder %s77, %s79
      %p86 = scmp.eq.s32.totalorder %s27, 1
      %p87 = por %p85, %p86
      %p88 = scmp.ne.s32.totalorder %s79, %s80
      %p89 = scmp.eq.s32.totalorder %s27, 0
      %p90 = por %p88, %p89
      %p91 = scmp.ne.s32.totalorder %s79, %s80
      %p92 = scmp.eq.s32.totalorder %s28, 1
      %p93 = por %p91, %p92
      %p95 = scmp.ne.s32.totalorder %s80, %s94
      %p96 = scmp.eq.s32.totalorder %s28, 0
      %p97 = por %p95, %p96
      %s99 = sadd.s32 %s98, 1
      %p102 = scmp.eq.s32.totalorder %s22, 1
      %p103 = scmp.ne.s32.totalorder %s98, %s100
      %p104 = scmp.eq.s32.totalorder %s22, 0
      %p105 = por %p103, %p104
      %p106 = scmp.ne.s32.totalorder %s98, %s100
      %p107 = scmp.eq.s32.totalorder %s27, 1
      %p108 = por %p106, %p107
      %p109 = scmp.ne.s32.totalorder %s100, %s101
      %p110 = scmp.eq.s32.totalorder %s27, 0
      %p111 = por %p109, %p110
      %p112 = scmp.ne.s32.totalorder %s100, %s101
      %p113 = scmp.eq.s32.totalorder %s28, 1
      %p114 = por %p112, %p113
      %p116 = scmp.ne.s32.totalorder %s101, %s115
      %p117 = scmp.eq.s32.totalorder %s28, 0
      %p118 = por %p116, %p117
      %s120 = sadd.s32 %s119, 1
      %p123 = scmp.eq.s32.totalorder %s22, 1
      %p124 = scmp.ne.s32.totalorder %s119, %s121
      %p125 = scmp.eq.s32.totalorder %s22, 0
      %p126 = por %p124, %p125
      %p127 = scmp.ne.s32.totalorder %s119, %s121
      %p128 = scmp.eq.s32.totalorder %s27, 1
      %p129 = por %p127, %p128
      %p130 = scmp.ne.s32.totalorder %s121, %s122
      %p131 = scmp.eq.s32.totalorder %s27, 0
      %p132 = por %p130, %p131
      %p133 = scmp.ne.s32.totalorder %s121, %s122
      %p134 = scmp.eq.s32.totalorder %s28, 1
      %p135 = por %p133, %p134
      %p137 = scmp.ne.s32.totalorder %s122, %s136
      %p138 = scmp.eq.s32.totalorder %s28, 0
      %p139 = por %p137, %p138
      %s141 = sadd.s32 %s140, 1
      %p144 = scmp.eq.s32.totalorder %s22, 1
      %p145 = scmp.ne.s32.totalorder %s140, %s142
      %p146 = scmp.eq.s32.totalorder %s22, 0
      %p147 = por %p145, %p146
      %p148 = scmp.ne.s32.totalorder %s140, %s142
      %p149 = scmp.eq.s32.totalorder %s27, 1
      %p150 = por %p148, %p149
      %p151 = scmp.ne.s32.totalorder %s142, %s143
      %p152 = scmp.eq.s32.totalorder %s27, 0
      %p153 = por %p151, %p152
      %p154 = scmp.ne.s32.totalorder %s142, %s143
      %p155 = scmp.eq.s32.totalorder %s28, 1
      %p156 = por %p154, %p155
      %p158 = scmp.ne.s32.totalorder %s143, %s157
      %p159 = scmp.eq.s32.totalorder %s28, 0
      %p160 = por %p158, %p159
      %s162 = sadd.s32 %s161, 1
      %p165 = scmp.eq.s32.totalorder %s22, 1
      %p166 = scmp.ne.s32.totalorder %s161, %s163
      %p167 = scmp.eq.s32.totalorder %s22, 0
      %p168 = por %p166, %p167
      %p169 = scmp.ne.s32.totalorder %s161, %s163
      %p170 = scmp.eq.s32.totalorder %s27, 1
      %p171 = por %p169, %p170
      %p172 = scmp.ne.s32.totalorder %s163, %s164
      %p173 = scmp.eq.s32.totalorder %s27, 0
      %p174 = por %p172, %p173
      %p175 = scmp.ne.s32.totalorder %s163, %s164
      %p176 = scmp.eq.s32.totalorder %s28, 1
      %p177 = por %p175, %p176
      %p179 = scmp.ne.s32.totalorder %s164, %s178
      %p180 = scmp.eq.s32.totalorder %s28, 0
      %p181 = por %p179, %p180
      %s183 = sadd.s32 %s182, 1
      %p186 = scmp.eq.s32.totalorder %s22, 1
      %p187 = scmp.ne.s32.totalorder %s182, %s184
      %p188 = scmp.eq.s32.totalorder %s22, 0
      %p189 = por %p187, %p188
      %p190 = scmp.ne.s32.totalorder %s182, %s184
      %p191 = scmp.eq.s32.totalorder %s27, 1
      %p192 = por %p190, %p191
      %p193 = scmp.ne.s32.totalorder %s184, %s185
      %p194 = scmp.eq.s32.totalorder %s27, 0
      %p195 = por %p193, %p194
      %p196 = scmp.ne.s32.totalorder %s184, %s185
      %p197 = scmp.eq.s32.totalorder %s28, 1
      %p198 = por %p196, %p197
      %p200 = scmp.ne.s32.totalorder %s185, %s199
      %p201 = scmp.eq.s32.totalorder %s28, 0
      %p202 = por %p200, %p201
      %s204 = sadd.s32 %s203, 1
      %p207 = scmp.eq.s32.totalorder %s22, 1
      %p208 = scmp.ne.s32.totalorder %s203, %s205
      %p209 = scmp.eq.s32.totalorder %s22, 0
      %p210 = por %p208, %p209
      %p211 = scmp.ne.s32.totalorder %s203, %s205
      %p212 = scmp.eq.s32.totalorder %s27, 1
      %p213 = por %p211, %p212
      %p214 = scmp.ne.s32.totalorder %s205, %s206
      %p215 = scmp.eq.s32.totalorder %s27, 0
      %p216 = por %p214, %p215
      %p217 = scmp.ne.s32.totalorder %s205, %s206
      %p218 = scmp.eq.s32.totalorder %s28, 1
      %p219 = por %p217, %p218
      %p221 = scmp.ne.s32.totalorder %s206, %s220
      %p222 = scmp.eq.s32.totalorder %s28, 0
      %p223 = por %p221, %p222
      %s225 = sadd.s32 %s224, 1
      %p228 = scmp.eq.s32.totalorder %s22, 1
      %p229 = scmp.ne.s32.totalorder %s224, %s226
      %p230 = scmp.eq.s32.totalorder %s22, 0
      %p231 = por %p229, %p230
      %p232 = scmp.ne.s32.totalorder %s224, %s226
      %p233 = scmp.eq.s32.totalorder %s27, 1
      %p234 = por %p232, %p233
      %p235 = scmp.ne.s32.totalorder %s226, %s227
      %p236 = scmp.eq.s32.totalorder %s27, 0
      %p237 = por %p235, %p236
      %p238 = scmp.ne.s32.totalorder %s226, %s227
      %p239 = scmp.eq.s32.totalorder %s28, 1
      %p240 = por %p238, %p239
      %p242 = scmp.ne.s32.totalorder %s227, %s241
      %p243 = scmp.eq.s32.totalorder %s28, 0
      %p244 = por %p242, %p243
      %s246 = sadd.s32 %s245, 1
      %p249 = scmp.eq.s32.totalorder %s22, 1
      %p250 = scmp.ne.s32.totalorder %s245, %s247
      %p251 = scmp.eq.s32.totalorder %s22, 0
      %p252 = por %p250, %p251
      %p253 = scmp.ne.s32.totalorder %s245, %s247
      %p254 = scmp.eq.s32.totalorder %s27, 1
      %p255 = por %p253, %p254
      %p256 = scmp.ne.s32.totalorder %s247, %s248
      %p257 = scmp.eq.s32.totalorder %s27, 0
      %p258 = por %p256, %p257
      %p259 = scmp.ne.s32.totalorder %s247, %s248
      %p260 = scmp.eq.s32.totalorder %s28, 1
      %p261 = por %p259, %p260
      %p263 = scmp.ne.s32.totalorder %s248, %s262
      %p264 = scmp.eq.s32.totalorder %s28, 0
      %p265 = por %p263, %p264
      %s267 = sadd.s32 %s266, 1
      %p270 = scmp.eq.s32.totalorder %s22, 1
      %p271 = scmp.ne.s32.totalorder %s266, %s268
      %p272 = scmp.eq.s32.totalorder %s22, 0
      %p273 = por %p271, %p272
      %p274 = scmp.ne.s32.totalorder %s266, %s268
      %p275 = scmp.eq.s32.totalorder %s27, 1
      %p276 = por %p274, %p275
      %p277 = scmp.ne.s32.totalorder %s268, %s269
      %p278 = scmp.eq.s32.totalorder %s27, 0
      %p279 = por %p277, %p278
      %p280 = scmp.ne.s32.totalorder %s268, %s269
      %p281 = scmp.eq.s32.totalorder %s28, 1
      %p282 = por %p280, %p281
      %p284 = scmp.ne.s32.totalorder %s269, %s283
      %p285 = scmp.eq.s32.totalorder %s28, 0
      %p286 = por %p284, %p285
      %s288 = sadd.s32 %s287, 1
      %p291 = scmp.eq.s32.totalorder %s22, 1
      %p292 = scmp.ne.s32.totalorder %s287, %s289
      %p293 = scmp.eq.s32.totalorder %s22, 0
      %p294 = por %p292, %p293
      %p295 = scmp.ne.s32.totalorder %s287, %s289
      %p296 = scmp.eq.s32.totalorder %s27, 1
      %p297 = por %p295, %p296
      %p298 = scmp.ne.s32.totalorder %s289, %s290
      %p299 = scmp.eq.s32.totalorder %s27, 0
      %p300 = por %p298, %p299
      %p301 = scmp.ne.s32.totalorder %s289, %s290
      %p302 = scmp.eq.s32.totalorder %s28, 1
      %p303 = por %p301, %p302
      %p305 = scmp.ne.s32.totalorder %s290, %s304
      %p306 = scmp.eq.s32.totalorder %s28, 0
      %p307 = por %p305, %p306
      %s308 = ssub.s32 %s22, %s29
      %p309 = scmp.eq.s32.totalorder %s308, 0
      %s311 = sadd.s32 %s310, 1
      %s312 = scalar_select %p309, %s310, %s311
      %p315 = pneg %p309
      %p316 = scmp.eq.s32.totalorder %s22, 1
      %p317 = por %p315, %p316
      %p318 = scmp.ne.s32.totalorder %s310, %s313
      %p319 = scmp.eq.s32.totalorder %s22, 0
      %p320 = por %p318, %p319
      %p321 = scmp.ne.s32.totalorder %s310, %s313
      %p322 = scmp.eq.s32.totalorder %s27, 1
      %p323 = por %p321, %p322
      %p324 = scmp.ne.s32.totalorder %s313, %s314
      %p325 = scmp.eq.s32.totalorder %s27, 0
      %p326 = por %p324, %p325
      %p327 = scmp.ne.s32.totalorder %s313, %s314
      %p328 = scmp.eq.s32.totalorder %s28, 1
      %p329 = por %p327, %p328
      %p331 = scmp.ne.s32.totalorder %s314, %s330
      %p332 = scmp.eq.s32.totalorder %s28, 0
      %p333 = por %p331, %p332
      %p334 = scmp.le.s32.totalorder 1, %s22
      %p335 = scmp.lt.s32.totalorder %s22, 3
      %p336 = pnand %p334, %p335
      %p337 = pneg %p336
      // Predicated region
      $region9: #{tpu_custom_call.1} parent=5 // pred_check
        _
      $region10: #{tpu_custom_call.1} parent=5 // pred_check_branch
        %339 = sbr.rel (%p336) target = $region12
      $region11: #{tpu_custom_call.1} parent=5 // pred_region
        %s340 = ssub.s32 %s22, 1
        // Predicated region
        $region13: #{tpu_custom_call.1} parent=11 // pred_check
          %p341 = pneg %p69
        $region14: #{tpu_custom_call.1} parent=11 // pred_check_branch
          %343 = sbr.rel (%p341) target = $region16
        $region15: #{tpu_custom_call.1} parent=11 // pred_region
          _
        $region16: #{tpu_custom_call.1} parent=11 // pred_fallthru
          _
        // Predicated region
        $region17: #{tpu_custom_call.1} parent=11 // pred_check
          %p344 = pneg %p90
        $region18: #{tpu_custom_call.1} parent=11 // pred_check_branch
          %346 = sbr.rel (%p344) target = $region20
        $region19: #{tpu_custom_call.1} parent=11 // pred_region
          _
        $region20: #{tpu_custom_call.1} parent=11 // pred_fallthru
          _
        // Predicated region
        $region21: #{tpu_custom_call.1} parent=11 // pred_check
          %p347 = pneg %p111
        $region22: #{tpu_custom_call.1} parent=11 // pred_check_branch
          %349 = sbr.rel (%p347) target = $region24
        $region23: #{tpu_custom_call.1} parent=11 // pred_region
          _
        $region24: #{tpu_custom_call.1} parent=11 // pred_fallthru
          _
        // Predicated region
        $region25: #{tpu_custom_call.1} parent=11 // pred_check
          %p350 = pneg %p132
        $region26: #{tpu_custom_call.1} parent=11 // pred_check_branch
          %352 = sbr.rel (%p350) target = $region28
        $region27: #{tpu_custom_call.1} parent=11 // pred_region
          _
        $region28: #{tpu_custom_call.1} parent=11 // pred_fallthru
          _
        // Predicated region
        $region29: #{tpu_custom_call.1} parent=11 // pred_check
          %p353 = pneg %p153
        $region30: #{tpu_custom_call.1} parent=11 // pred_check_branch
          %355 = sbr.rel (%p353) target = $region32
        $region31: #{tpu_custom_call.1} parent=11 // pred_region
          _
        $region32: #{tpu_custom_call.1} parent=11 // pred_fallthru
          _
        // Predicated region
        $region33: #{tpu_custom_call.1} parent=11 // pred_check
          %p356 = pneg %p174
        $region34: #{tpu_custom_call.1} parent=11 // pred_check_branch
          %358 = sbr.rel (%p356) target = $region36
        $region35: #{tpu_custom_call.1} parent=11 // pred_region
          _
        $region36: #{tpu_custom_call.1} parent=11 // pred_fallthru
          _
        // Predicated region
        $region37: #{tpu_custom_call.1} parent=11 // pred_check
          %p359 = pneg %p195
        $region38: #{tpu_custom_call.1} parent=11 // pred_check_branch
          %361 = sbr.rel (%p359) target = $region40
        $region39: #{tpu_custom_call.1} parent=11 // pred_region
          _
        $region40: #{tpu_custom_call.1} parent=11 // pred_fallthru
          _
        // Predicated region
        $region41: #{tpu_custom_call.1} parent=11 // pred_check
          %p362 = pneg %p216
        $region42: #{tpu_custom_call.1} parent=11 // pred_check_branch
          %364 = sbr.rel (%p362) target = $region44
        $region43: #{tpu_custom_call.1} parent=11 // pred_region
          _
        $region44: #{tpu_custom_call.1} parent=11 // pred_fallthru
          _
        // Predicated region
        $region45: #{tpu_custom_call.1} parent=11 // pred_check
          %p365 = pneg %p237
        $region46: #{tpu_custom_call.1} parent=11 // pred_check_branch
          %367 = sbr.rel (%p365) target = $region48
        $region47: #{tpu_custom_call.1} parent=11 // pred_region
          _
        $region48: #{tpu_custom_call.1} parent=11 // pred_fallthru
          _
        // Predicated region
        $region49: #{tpu_custom_call.1} parent=11 // pred_check
          %p368 = pneg %p258
        $region50: #{tpu_custom_call.1} parent=11 // pred_check_branch
          %370 = sbr.rel (%p368) target = $region52
        $region51: #{tpu_custom_call.1} parent=11 // pred_region
          _
        $region52: #{tpu_custom_call.1} parent=11 // pred_fallthru
          _
        // Predicated region
        $region53: #{tpu_custom_call.1} parent=11 // pred_check
          %p371 = pneg %p279
        $region54: #{tpu_custom_call.1} parent=11 // pred_check_branch
          %373 = sbr.rel (%p371) target = $region56
        $region55: #{tpu_custom_call.1} parent=11 // pred_region
          _
        $region56: #{tpu_custom_call.1} parent=11 // pred_fallthru
          _
        // Predicated region
        $region57: #{tpu_custom_call.1} parent=11 // pred_check
          %p374 = pneg %p300
        $region58: #{tpu_custom_call.1} parent=11 // pred_check_branch
          %376 = sbr.rel (%p374) target = $region60
        $region59: #{tpu_custom_call.1} parent=11 // pred_region
          _
        $region60: #{tpu_custom_call.1} parent=11 // pred_fallthru
          _
      $region12: #{tpu_custom_call.1} parent=5 // pred_fallthru
        _
      %p377 = scmp.lt.s32.totalorder %s22, 2
      // Predicated region
      $region61: #{tpu_custom_call.1} parent=5 // pred_check
        %p378 = pneg %p377
      $region62: #{tpu_custom_call.1} parent=5 // pred_check_branch
        %380 = sbr.rel (%p378) target = $region64
      $region63: #{tpu_custom_call.1} parent=5 // pred_region
        // Predicated region
        $region65: #{tpu_custom_call.1} parent=63 // pred_check
          %p381 = pneg %p42
        $region66: #{tpu_custom_call.1} parent=63 // pred_check_branch
          %383 = sbr.rel (%p381) target = $region68
        $region67: #{tpu_custom_call.1} parent=63 // pred_region
          %s384 = smul.u32 2, %s22
          %p385 = scmp.lt.s32.totalorder %s384, 3
          %s386 = scalar_select %p385, %s384, 3
          %s387 = smul.addr %s386, 4
          %s388 = scalar_lea.vmem %s0, %s387
          %s389 = smul.u32 2, %s22
        $region68: #{tpu_custom_call.1} parent=63 // pred_fallthru
          _
      $region64: #{tpu_custom_call.1} parent=5 // pred_fallthru
        _
      %p390 = scmp.le.s32.totalorder 1, %s22
      %p391 = scmp.lt.s32.totalorder %s22, 3
      %p392 = pnand %p390, %p391
      %p393 = pneg %p392
      // Predicated region
      $region69: #{tpu_custom_call.1} parent=5 // pred_check
        _
      $region70: #{tpu_custom_call.1} parent=5 // pred_check_branch
        %395 = sbr.rel (%p392) target = $region72
      $region71: #{tpu_custom_call.1} parent=5 // pred_region
        %s396 = ssub.s32 %s22, 1
        %s397 = smul.u32 2, %s27
        %p398 = scmp.lt.s32.totalorder %s397, 3
        %s399 = scalar_select %p398, %s397, 3
        %s400 = smul.addr %s399, 4
        %s401 = scalar_lea.vmem %s0, %s400
        %p402 = pneg %p48
        %p403 = pneg %p45
        %p404 = pneg %p69
        %p405 = pneg %p66
        %p406 = pneg %p90
        %p407 = pneg %p87
        %p408 = pneg %p111
        %p409 = pneg %p108
        %p410 = pneg %p132
        %p411 = pneg %p129
        %p412 = pneg %p153
        %p413 = pneg %p150
        %p414 = pneg %p174
        %p415 = pneg %p171
        %p416 = pneg %p195
        %p417 = pneg %p192
        %p418 = pneg %p216
        %p419 = pneg %p213
        %p420 = pneg %p237
        %p421 = pneg %p234
        %p422 = pneg %p258
        %p423 = pneg %p255
        %p424 = pneg %p279
        %p425 = pneg %p276
        %p426 = pneg %p300
        %p427 = pneg %p297
        %p428 = pneg %p326
        %p429 = pneg %p323
        %s430 = sand.u32 %s313, 1
        %s431 = scalar_lea.sflag [#allocation3], %s430
        %s432 = sand.u32 %s313, 1
        %s433 = smul.addr %s432, 8
        %s434 = scalar_lea.vmem [#allocation2], %s433
        %s435 = smul.u32 2, %s27
        %p436 = scmp.lt.s32.totalorder %s435, 3
        %s437 = scalar_select %p436, %s435, 3
        %s438 = smul.addr %s437, 4
        %s439 = scalar_lea.vmem %s0, %s438
        %s440 = smul.u32 2, %s27
        %s441 = smul.u32 2, %s27
        %v442 = vld [vmem:[%s439] sm:$0xff]
        %v443 = vlaneseq
        %v444 = vand.u32 %v443, 127
        %v445 = vadd.s32 %v444, 128
        %vm446 = vcmp.lt.s32.totalorder %v444, 0
        %v447 = vsub.s32 0, %v444
        %v448 = vsel %vm446, %v447, %v444
        %v449 = vshrl.u32 %v448, 7
        %v450 = vand.u32 %v448, 127
        %v451 = vsub.s32 0, %v450
        %v452 = vsel %vm446, %v451, %v450
        %vm453 = vcmp.lt.s32.totalorder %v445, 0
        %v454 = vsub.s32 0, %v445
        %v455 = vsel %vm453, %v454, %v445
        %v456 = vshrl.u32 %v455, 7
        %v457 = vand.u32 %v455, 127
        %v458 = vsub.s32 0, %v457
        %v459 = vsel %vm453, %v458, %v457
        %vm460 = vcmp.ne.s32.totalorder %v452, 0
        %vm461 = vcmp.ne.s32.totalorder %v459, 0
        %vm462 = vcmp.lt.s32.totalorder %v452, 0
        %vm463 = vcmp.lt.s32.totalorder %v459, 0
        %vm464 = vmand %vm462, %vm460
        %vm465 = vmand %vm463, %vm461
        %v466 = vadd.s32 %v452, 128
        %v467 = vadd.s32 %v459, 128
        %v468 = vsel %vm464, %v466, %v452
        %v469 = vsel %vm465, %v467, %v459
        %v470 = vld [vmem:[%s1] sm:$0xff]
        %v471 = vld [vmem:[%s7] sm:$0xff]
        %473 = vset.pattern.permute.xlu0 0
        %474 = vperm.xlu0 %473, %v471
        %v475 = vpop.permute.xlu0 %474
        %v478 = vcombine.high %v442, %v442
        %vm479 = vcmask 31744
        %v481 = vsel %vm479, %v470, 0
        %vm483 = vcmask 1043456
        %v484 = vsel %vm483, %v442, 0
        %v486 = vsel %vm483, %v478, 0
        %488 = vmatprep.subr.mxu0 0.0
        %489 = vmatpush1.msra.mxu0 0.0
        %490 = vmatprep.subr.mxu0 0.0
        %491 = vmatpush1.msra.mxu0 0.0
        %492 = vmatprep.subr.mxu0 0.0
        %493 = vmatpush1.msra.mxu0 0.0
        %494 = vmatprep.subr.mxu0 0.0
        %495 = vmatpush1.msra.mxu0 0.0
        %496 = vmatprep.subr.mxu0 0.0
        %497 = vmatpush1.msra.mxu0 0.0
        %498 = vmatprep.subr.mxu0 0.0
        %499 = vmatpush1.msra.mxu0 0.0
        %500 = vmatprep.subr.mxu0 0.0
        %501 = vmatpush1.msra.mxu0 0.0
        %502 = vmatprep.subr.mxu0 0.0
        %503 = vmatpush1.msra.mxu0 0.0
        %504 = vmatprep.subr.mxu0 0.0
        %505 = vmatpush1.msra.mxu0 0.0
        %506 = vmatprep.subr.mxu0 0.0
        %507 = vmatpush1.msra.mxu0 0.0
        %508 = vmatprep.subr.mxu0 0.0
        %509 = vmatpush1.msra.mxu0 0.0
        %510 = vmatprep.subr.mxu0 0.0
        %511 = vmatpush1.msra.mxu0 0.0
        %512 = vmatprep.subr.mxu0 0.0
        %513 = vmatpush1.msra.mxu0 0.0
        %514 = vmatprep.subr.mxu0 0.0
        %515 = vmatpush1.msra.mxu0 0.0
        %516 = vmatprep.subr.mxu0 0.0
        %517 = vmatpush1.msra.mxu0 0.0
        %518 = vmatprep.subr.mxu0 %v486
        %519 = vmatpush1.msra.mxu0 %v484
        %520 = vmatprep.subr.mxu0 0.0
        %521 = vmatpush2.msra.mxu0 0.0
        %522 = vmatprep.subr.mxu0 0.0
        %523 = vmatpush2.msra.mxu0 0.0
        %524 = vmatprep.subr.mxu0 0.0
        %525 = vmatpush2.msra.mxu0 0.0
        %526 = vmatprep.subr.mxu0 0.0
        %527 = vmatpush2.msra.mxu0 0.0
        %528 = vmatprep.subr.mxu0 0.0
        %529 = vmatpush2.msra.mxu0 0.0
        %530 = vmatprep.subr.mxu0 0.0
        %531 = vmatpush2.msra.mxu0 0.0
        %532 = vmatprep.subr.mxu0 0.0
        %533 = vmatpush2.msra.mxu0 0.0
        %534 = vmatprep.subr.mxu0 0.0
        %535 = vmatpush2.msra.mxu0 0.0
        %536 = vmatprep.subr.mxu0 0.0
        %537 = vmatpush2.msra.mxu0 0.0
        %538 = vmatprep.subr.mxu0 0.0
        %539 = vmatpush2.msra.mxu0 0.0
        %540 = vmatprep.subr.mxu0 0.0
        %541 = vmatpush2.msra.mxu0 0.0
        %542 = vmatprep.subr.mxu0 0.0
        %543 = vmatpush2.msra.mxu0 0.0
        %544 = vmatprep.subr.mxu0 0.0
        %545 = vmatpush2.msra.mxu0 0.0
        %546 = vmatprep.subr.mxu0 0.0
        %547 = vmatpush2.msra.mxu0 0.0
        %548 = vmatprep.subr.mxu0 0.0
        %549 = vmatpush2.msra.mxu0 0.0
        %550 = vmatprep.subr.mxu0 0.0
        %551 = vmatpush2.msra.mxu0 0.0
        %552 = vmatprep.mubr.f32.mxu0 0.0
        %553 = vmatmul.mubr.f32.gmra.mxu0 %v481
        %v554 = vpop.f32.mrf.mxu0
        %v555 = vadd.f32 %v475, %v554
        %v556 = vpop.f32.mrf.mxu0
        %v557 = vadd.f32 %v475, %v556
        %558 = vdwg.mxu0
        %v559 = vmax.f32 %v555, 0.0
        %v560 = vmax.f32 %v557, 0.0
        %561 = vrot.lane.b32.xlu0 %v559, 1
        %v562 = vpop.permute.xlu0 %561
        %563 = vrot.lane.b32.xlu0 %v560, 1
        %v564 = vpop.permute.xlu0 %563
        %vm565 = vcmp.lt.s32.totalorder %v444, 1
        %v566 = vsel %vm565, %v562, %v564
        %v567 = vsel %vm565, %v564, %v562
        %vm568 = vcmp.lt.s32.totalorder %v468, 1
        %vm569 = vcmp.lt.s32.totalorder %v469, 1
        %v570 = vsel %vm568, 1, 0
        %v571 = vsel %vm569, 1, 0
        %vm572 = vcmp.eq.s32.totalorder %v570, 1
        %vm573 = vcmp.eq.s32.totalorder %v571, 1
        %v574 = vsel %vm572, %v566, %v567
        %v575 = vsel %vm573, %v567, %v566
        %576 = vrot.lane.b32.xlu0 %v559, 127
        %v577 = vpop.permute.xlu0 %576
        %578 = vrot.lane.b32.xlu0 %v560, 127
        %v579 = vpop.permute.xlu0 %578
        %vm580 = vcmp.lt.s32.totalorder %v444, 127
        %v581 = vsel %vm580, %v577, %v579
        %v582 = vsel %vm580, %v579, %v577
        %vm583 = vcmp.ge.s32.totalorder %v468, 127
        %vm584 = vcmp.ge.s32.totalorder %v469, 127
        %v585 = vsel %vm583, 1, 0
        %v586 = vsel %vm584, 1, 0
        %vm587 = vcmp.eq.s32.totalorder %v585, 1
        %vm588 = vcmp.eq.s32.totalorder %v586, 1
        %v589 = vsel %vm587, %v582, %v581
        %v590 = vsel %vm588, %v581, %v582
        %v591 = vld [vmem:[%s2] sm:$0xff]
        %v592 = vld [vmem:[%s2 + $0x8] sm:$0xff]
        %v593 = vld [vmem:[%s8] sm:$0xff]
        %v594 = vld [vmem:[%s8 + $0x8] sm:$0xff]
        %596 = vset.pattern.permute.xlu0 0
        %597 = vperm.xlu0 %596, %v593
        %v598 = vpop.permute.xlu0 %597
        %601 = vset.pattern.permute.xlu0 0
        %602 = vperm.xlu0 %601, %v594
        %v603 = vpop.permute.xlu0 %602
        %vm605 = vcmask 195584
        %v607 = vsel %vm605, %v591, 0
        %v610 = vsel %vm605, %v592, 0
        %612 = vmatprep.subr.mxu0 0.0
        %613 = vmatpush1.msra.mxu0 0.0
        %614 = vmatprep.subr.mxu0 0.0
        %615 = vmatpush1.msra.mxu0 0.0
        %616 = vmatprep.subr.mxu0 0.0
        %617 = vmatpush1.msra.mxu0 0.0
        %618 = vmatprep.subr.mxu0 0.0
        %619 = vmatpush1.msra.mxu0 0.0
        %620 = vmatprep.subr.mxu0 0.0
        %621 = vmatpush1.msra.mxu0 0.0
        %622 = vmatprep.subr.mxu0 0.0
        %623 = vmatpush1.msra.mxu0 0.0
        %624 = vmatprep.subr.mxu0 0.0
        %625 = vmatpush1.msra.mxu0 0.0
        %626 = vmatprep.subr.mxu0 0.0
        %627 = vmatpush1.msra.mxu0 0.0
        %628 = vmatprep.subr.mxu0 0.0
        %629 = vmatpush1.msra.mxu0 0.0
        %630 = vmatprep.subr.mxu0 0.0
        %631 = vmatpush1.msra.mxu0 0.0
        %632 = vmatprep.subr.mxu0 0.0
        %633 = vmatpush1.msra.mxu0 0.0
        %634 = vmatprep.subr.mxu0 0.0
        %635 = vmatpush1.msra.mxu0 0.0
        %636 = vmatprep.subr.mxu0 0.0
        %637 = vmatpush1.msra.mxu0 0.0
        %638 = vmatprep.subr.mxu0 %v590
        %639 = vmatpush1.msra.mxu0 %v589
        %640 = vmatprep.subr.mxu0 %v560
        %641 = vmatpush1.msra.mxu0 %v559
        %642 = vmatprep.subr.mxu0 %v575
        %643 = vmatpush1.msra.mxu0 %v574
        %644 = vmatprep.subr.mxu0 0.0
        %645 = vmatpush2.msra.mxu0 0.0
        %646 = vmatprep.subr.mxu0 0.0
        %647 = vmatpush2.msra.mxu0 0.0
        %648 = vmatprep.subr.mxu0 0.0
        %649 = vmatpush2.msra.mxu0 0.0
        %650 = vmatprep.subr.mxu0 0.0
        %651 = vmatpush2.msra.mxu0 0.0
        %652 = vmatprep.subr.mxu0 0.0
        %653 = vmatpush2.msra.mxu0 0.0
        %654 = vmatprep.subr.mxu0 0.0
        %655 = vmatpush2.msra.mxu0 0.0
        %656 = vmatprep.subr.mxu0 0.0
        %657 = vmatpush2.msra.mxu0 0.0
        %658 = vmatprep.subr.mxu0 0.0
        %659 = vmatpush2.msra.mxu0 0.0
        %660 = vmatprep.subr.mxu0 0.0
        %661 = vmatpush2.msra.mxu0 0.0
        %662 = vmatprep.subr.mxu0 0.0
        %663 = vmatpush2.msra.mxu0 0.0
        %664 = vmatprep.subr.mxu0 0.0
        %665 = vmatpush2.msra.mxu0 0.0
        %666 = vmatprep.subr.mxu0 0.0
        %667 = vmatpush2.msra.mxu0 0.0
        %668 = vmatprep.subr.mxu0 0.0
        %669 = vmatpush2.msra.mxu0 0.0
        %670 = vmatprep.subr.mxu0 0.0
        %671 = vmatpush2.msra.mxu0 0.0
        %672 = vmatprep.subr.mxu0 0.0
        %673 = vmatpush2.msra.mxu0 0.0
        %674 = vmatprep.subr.mxu0 0.0
        %675 = vmatpush2.msra.mxu0 0.0
        %676 = vmatprep.mubr.f32.mxu0 0.0
        %677 = vmatmul.mubr.f32.gmra.mxu0 %v607
        %v678 = vpop.f32.mrf.mxu0
        %v679 = vadd.f32 %v598, %v678
        %v680 = vpop.f32.mrf.mxu0
        %v681 = vadd.f32 %v598, %v680
        %682 = vmatprep.mubr.f32.mxu0 0.0
        %683 = vmatmul.mubr.f32.gmra.mxu0 %v610
        %v684 = vpop.f32.mrf.mxu0
        %v685 = vadd.f32 %v603, %v684
        %v686 = vpop.f32.mrf.mxu0
        %v687 = vadd.f32 %v603, %v686
        %688 = vdwg.mxu0
        %v689 = vmax.f32 %v679, 0.0
        %v690 = vmax.f32 %v681, 0.0
        %v691 = vmax.f32 %v685, 0.0
        %v692 = vmax.f32 %v687, 0.0
        %v693 = vld [vmem:[%s3] sm:$0xff]
        %v694 = vld [vmem:[%s3 + $0x8] sm:$0xff]
        %v695 = vld [vmem:[%s9] sm:$0xff]
        %v696 = vld [vmem:[%s9 + $0x8] sm:$0xff]
        %698 = vset.pattern.permute.xlu0 0
        %699 = vperm.xlu0 %698, %v695
        %v700 = vpop.permute.xlu0 %699
        %703 = vset.pattern.permute.xlu0 0
        %704 = vperm.xlu0 %703, %v696
        %v705 = vpop.permute.xlu0 %704
        %vm707 = vcmask 130048
        %v709 = vsel %vm707, %v693, 0
        %v712 = vsel %vm707, %v694, 0
        %714 = vmatprep.subr.mxu0 0.0
        %715 = vmatpush1.msra.mxu0 0.0
        %716 = vmatprep.subr.mxu0 0.0
        %717 = vmatpush1.msra.mxu0 0.0
        %718 = vmatprep.subr.mxu0 0.0
        %719 = vmatpush1.msra.mxu0 0.0
        %720 = vmatprep.subr.mxu0 0.0
        %721 = vmatpush1.msra.mxu0 0.0
        %722 = vmatprep.subr.mxu0 0.0
        %723 = vmatpush1.msra.mxu0 0.0
        %724 = vmatprep.subr.mxu0 0.0
        %725 = vmatpush1.msra.mxu0 0.0
        %726 = vmatprep.subr.mxu0 0.0
        %727 = vmatpush1.msra.mxu0 0.0
        %728 = vmatprep.subr.mxu0 0.0
        %729 = vmatpush1.msra.mxu0 0.0
        %730 = vmatprep.subr.mxu0 0.0
        %731 = vmatpush1.msra.mxu0 0.0
        %732 = vmatprep.subr.mxu0 0.0
        %733 = vmatpush1.msra.mxu0 0.0
        %734 = vmatprep.subr.mxu0 0.0
        %735 = vmatpush1.msra.mxu0 0.0
        %736 = vmatprep.subr.mxu0 0.0
        %737 = vmatpush1.msra.mxu0 0.0
        %738 = vmatprep.subr.mxu0 0.0
        %739 = vmatpush1.msra.mxu0 0.0
        %740 = vmatprep.subr.mxu0 0.0
        %741 = vmatpush1.msra.mxu0 0.0
        %742 = vmatprep.subr.mxu0 %v692
        %743 = vmatpush1.msra.mxu0 %v691
        %744 = vmatprep.subr.mxu0 %v690
        %745 = vmatpush1.msra.mxu0 %v689
        %746 = vmatprep.subr.mxu0 0.0
        %747 = vmatpush2.msra.mxu0 0.0
        %748 = vmatprep.subr.mxu0 0.0
        %749 = vmatpush2.msra.mxu0 0.0
        %750 = vmatprep.subr.mxu0 0.0
        %751 = vmatpush2.msra.mxu0 0.0
        %752 = vmatprep.subr.mxu0 0.0
        %753 = vmatpush2.msra.mxu0 0.0
        %754 = vmatprep.subr.mxu0 0.0
        %755 = vmatpush2.msra.mxu0 0.0
        %756 = vmatprep.subr.mxu0 0.0
        %757 = vmatpush2.msra.mxu0 0.0
        %758 = vmatprep.subr.mxu0 0.0
        %759 = vmatpush2.msra.mxu0 0.0
        %760 = vmatprep.subr.mxu0 0.0
        %761 = vmatpush2.msra.mxu0 0.0
        %762 = vmatprep.subr.mxu0 0.0
        %763 = vmatpush2.msra.mxu0 0.0
        %764 = vmatprep.subr.mxu0 0.0
        %765 = vmatpush2.msra.mxu0 0.0
        %766 = vmatprep.subr.mxu0 0.0
        %767 = vmatpush2.msra.mxu0 0.0
        %768 = vmatprep.subr.mxu0 0.0
        %769 = vmatpush2.msra.mxu0 0.0
        %770 = vmatprep.subr.mxu0 0.0
        %771 = vmatpush2.msra.mxu0 0.0
        %772 = vmatprep.subr.mxu0 0.0
        %773 = vmatpush2.msra.mxu0 0.0
        %774 = vmatprep.subr.mxu0 0.0
        %775 = vmatpush2.msra.mxu0 0.0
        %776 = vmatprep.subr.mxu0 0.0
        %777 = vmatpush2.msra.mxu0 0.0
        %778 = vmatprep.mubr.f32.mxu0 0.0
        %779 = vmatmul.mubr.f32.gmra.mxu0 %v709
        %v780 = vpop.f32.mrf.mxu0
        %v781 = vadd.f32 %v700, %v780
        %v782 = vpop.f32.mrf.mxu0
        %v783 = vadd.f32 %v700, %v782
        %784 = vmatprep.mubr.f32.mxu0 0.0
        %785 = vmatmul.mubr.f32.gmra.mxu0 %v712
        %v786 = vpop.f32.mrf.mxu0
        %v787 = vadd.f32 %v705, %v786
        %v788 = vpop.f32.mrf.mxu0
        %v789 = vadd.f32 %v705, %v788
        %790 = vdwg.mxu0
        %v791 = vmax.f32 %v781, 0.0
        %v792 = vmax.f32 %v783, 0.0
        %v793 = vmax.f32 %v787, 0.0
        %v794 = vmax.f32 %v789, 0.0
        %795 = vrot.lane.b32.xlu0 %v791, 1
        %v796 = vpop.permute.xlu0 %795
        %797 = vrot.lane.b32.xlu0 %v793, 1
        %v798 = vpop.permute.xlu0 %797
        %799 = vrot.lane.b32.xlu0 %v792, 1
        %v800 = vpop.permute.xlu0 %799
        %801 = vrot.lane.b32.xlu0 %v794, 1
        %v802 = vpop.permute.xlu0 %801
        %v803 = vsel %vm565, %v796, %v800
        %v804 = vsel %vm565, %v798, %v802
        %v805 = vsel %vm565, %v800, %v796
        %v806 = vsel %vm565, %v802, %v798
        %v807 = vsel %vm572, %v803, %v805
        %v808 = vsel %vm573, %v805, %v803
        %v809 = vsel %vm572, %v804, %v806
        %v810 = vsel %vm573, %v806, %v804
        %811 = vrot.lane.b32.xlu0 %v791, 127
        %v812 = vpop.permute.xlu0 %811
        %813 = vrot.lane.b32.xlu0 %v793, 127
        %v814 = vpop.permute.xlu0 %813
        %815 = vrot.lane.b32.xlu0 %v792, 127
        %v816 = vpop.permute.xlu0 %815
        %817 = vrot.lane.b32.xlu0 %v794, 127
        %v818 = vpop.permute.xlu0 %817
        %v819 = vsel %vm580, %v812, %v816
        %v820 = vsel %vm580, %v814, %v818
        %v821 = vsel %vm580, %v816, %v812
        %v822 = vsel %vm580, %v818, %v814
        %v823 = vsel %vm587, %v821, %v819
        %v824 = vsel %vm588, %v819, %v821
        %v825 = vsel %vm587, %v822, %v820
        %v826 = vsel %vm588, %v820, %v822
        %v827 = vld [vmem:[%s4] sm:$0xff]
        %v828 = vld [vmem:[%s4 + $0x8] sm:$0xff]
        %v829 = vld [vmem:[%s10] sm:$0xff]
        %v830 = vld [vmem:[%s10 + $0x8] sm:$0xff]
        %832 = vset.pattern.permute.xlu0 0
        %833 = vperm.xlu0 %832, %v829
        %v834 = vpop.permute.xlu0 %833
        %837 = vset.pattern.permute.xlu0 0
        %838 = vperm.xlu0 %837, %v830
        %v839 = vpop.permute.xlu0 %838
        %vm841 = vcmask 392192
        %v843 = vsel %vm841, %v827, 0
        %v846 = vsel %vm841, %v828, 0
        %848 = vmatprep.subr.mxu0 0.0
        %849 = vmatpush1.msra.mxu0 0.0
        %850 = vmatprep.subr.mxu0 0.0
        %851 = vmatpush1.msra.mxu0 0.0
        %852 = vmatprep.subr.mxu0 0.0
        %853 = vmatpush1.msra.mxu0 0.0
        %854 = vmatprep.subr.mxu0 0.0
        %855 = vmatpush1.msra.mxu0 0.0
        %856 = vmatprep.subr.mxu0 0.0
        %857 = vmatpush1.msra.mxu0 0.0
        %858 = vmatprep.subr.mxu0 0.0
        %859 = vmatpush1.msra.mxu0 0.0
        %860 = vmatprep.subr.mxu0 0.0
        %861 = vmatpush1.msra.mxu0 0.0
        %862 = vmatprep.subr.mxu0 0.0
        %863 = vmatpush1.msra.mxu0 0.0
        %864 = vmatprep.subr.mxu0 0.0
        %865 = vmatpush1.msra.mxu0 0.0
        %866 = vmatprep.subr.mxu0 0.0
        %867 = vmatpush1.msra.mxu0 0.0
        %868 = vmatprep.subr.mxu0 %v826
        %869 = vmatpush1.msra.mxu0 %v825
        %870 = vmatprep.subr.mxu0 %v824
        %871 = vmatpush1.msra.mxu0 %v823
        %872 = vmatprep.subr.mxu0 %v794
        %873 = vmatpush1.msra.mxu0 %v793
        %874 = vmatprep.subr.mxu0 %v792
        %875 = vmatpush1.msra.mxu0 %v791
        %876 = vmatprep.subr.mxu0 %v810
        %877 = vmatpush1.msra.mxu0 %v809
        %878 = vmatprep.subr.mxu0 %v808
        %879 = vmatpush1.msra.mxu0 %v807
        %880 = vmatprep.subr.mxu0 0.0
        %881 = vmatpush2.msra.mxu0 0.0
        %882 = vmatprep.subr.mxu0 0.0
        %883 = vmatpush2.msra.mxu0 0.0
        %884 = vmatprep.subr.mxu0 0.0
        %885 = vmatpush2.msra.mxu0 0.0
        %886 = vmatprep.subr.mxu0 0.0
        %887 = vmatpush2.msra.mxu0 0.0
        %888 = vmatprep.subr.mxu0 0.0
        %889 = vmatpush2.msra.mxu0 0.0
        %890 = vmatprep.subr.mxu0 0.0
        %891 = vmatpush2.msra.mxu0 0.0
        %892 = vmatprep.subr.mxu0 0.0
        %893 = vmatpush2.msra.mxu0 0.0
        %894 = vmatprep.subr.mxu0 0.0
        %895 = vmatpush2.msra.mxu0 0.0
        %896 = vmatprep.subr.mxu0 0.0
        %897 = vmatpush2.msra.mxu0 0.0
        %898 = vmatprep.subr.mxu0 0.0
        %899 = vmatpush2.msra.mxu0 0.0
        %900 = vmatprep.subr.mxu0 0.0
        %901 = vmatpush2.msra.mxu0 0.0
        %902 = vmatprep.subr.mxu0 0.0
        %903 = vmatpush2.msra.mxu0 0.0
        %904 = vmatprep.subr.mxu0 0.0
        %905 = vmatpush2.msra.mxu0 0.0
        %906 = vmatprep.subr.mxu0 0.0
        %907 = vmatpush2.msra.mxu0 0.0
        %908 = vmatprep.subr.mxu0 0.0
        %909 = vmatpush2.msra.mxu0 0.0
        %910 = vmatprep.subr.mxu0 0.0
        %911 = vmatpush2.msra.mxu0 0.0
        %912 = vmatprep.mubr.f32.mxu0 0.0
        %913 = vmatmul.mubr.f32.gmra.mxu0 %v843
        %v914 = vpop.f32.mrf.mxu0
        %v915 = vadd.f32 %v834, %v914
        %v916 = vpop.f32.mrf.mxu0
        %v917 = vadd.f32 %v834, %v916
        %918 = vmatprep.mubr.f32.mxu0 0.0
        %919 = vmatmul.mubr.f32.gmra.mxu0 %v846
        %v920 = vpop.f32.mrf.mxu0
        %v921 = vadd.f32 %v839, %v920
        %v922 = vpop.f32.mrf.mxu0
        %v923 = vadd.f32 %v839, %v922
        %924 = vdwg.mxu0
        %v925 = vmax.f32 %v915, 0.0
        %v926 = vmax.f32 %v917, 0.0
        %v927 = vmax.f32 %v921, 0.0
        %v928 = vmax.f32 %v923, 0.0
        %v929 = vld [vmem:[%s5] sm:$0xff]
        %v930 = vld [vmem:[%s11] sm:$0xff]
        %932 = vset.pattern.permute.xlu0 0
        %933 = vperm.xlu0 %932, %v930
        %v934 = vpop.permute.xlu0 %933
        %v937 = vsel %vm707, %v929, 0
        %939 = vmatprep.subr.mxu0 0.0
        %940 = vmatpush1.msra.mxu0 0.0
        %941 = vmatprep.subr.mxu0 0.0
        %942 = vmatpush1.msra.mxu0 0.0
        %943 = vmatprep.subr.mxu0 0.0
        %944 = vmatpush1.msra.mxu0 0.0
        %945 = vmatprep.subr.mxu0 0.0
        %946 = vmatpush1.msra.mxu0 0.0
        %947 = vmatprep.subr.mxu0 0.0
        %948 = vmatpush1.msra.mxu0 0.0
        %949 = vmatprep.subr.mxu0 0.0
        %950 = vmatpush1.msra.mxu0 0.0
        %951 = vmatprep.subr.mxu0 0.0
        %952 = vmatpush1.msra.mxu0 0.0
        %953 = vmatprep.subr.mxu0 0.0
        %954 = vmatpush1.msra.mxu0 0.0
        %955 = vmatprep.subr.mxu0 0.0
        %956 = vmatpush1.msra.mxu0 0.0
        %957 = vmatprep.subr.mxu0 0.0
        %958 = vmatpush1.msra.mxu0 0.0
        %959 = vmatprep.subr.mxu0 0.0
        %960 = vmatpush1.msra.mxu0 0.0
        %961 = vmatprep.subr.mxu0 0.0
        %962 = vmatpush1.msra.mxu0 0.0
        %963 = vmatprep.subr.mxu0 0.0
        %964 = vmatpush1.msra.mxu0 0.0
        %965 = vmatprep.subr.mxu0 0.0
        %966 = vmatpush1.msra.mxu0 0.0
        %967 = vmatprep.subr.mxu0 %v928
        %968 = vmatpush1.msra.mxu0 %v927
        %969 = vmatprep.subr.mxu0 %v926
        %970 = vmatpush1.msra.mxu0 %v925
        %971 = vmatprep.subr.mxu0 0.0
        %972 = vmatpush2.msra.mxu0 0.0
        %973 = vmatprep.subr.mxu0 0.0
        %974 = vmatpush2.msra.mxu0 0.0
        %975 = vmatprep.subr.mxu0 0.0
        %976 = vmatpush2.msra.mxu0 0.0
        %977 = vmatprep.subr.mxu0 0.0
        %978 = vmatpush2.msra.mxu0 0.0
        %979 = vmatprep.subr.mxu0 0.0
        %980 = vmatpush2.msra.mxu0 0.0
        %981 = vmatprep.subr.mxu0 0.0
        %982 = vmatpush2.msra.mxu0 0.0
        %983 = vmatprep.subr.mxu0 0.0
        %984 = vmatpush2.msra.mxu0 0.0
        %985 = vmatprep.subr.mxu0 0.0
        %986 = vmatpush2.msra.mxu0 0.0
        %987 = vmatprep.subr.mxu0 0.0
        %988 = vmatpush2.msra.mxu0 0.0
        %989 = vmatprep.subr.mxu0 0.0
        %990 = vmatpush2.msra.mxu0 0.0
        %991 = vmatprep.subr.mxu0 0.0
        %992 = vmatpush2.msra.mxu0 0.0
        %993 = vmatprep.subr.mxu0 0.0
        %994 = vmatpush2.msra.mxu0 0.0
        %995 = vmatprep.subr.mxu0 0.0
        %996 = vmatpush2.msra.mxu0 0.0
        %997 = vmatprep.subr.mxu0 0.0
        %998 = vmatpush2.msra.mxu0 0.0
        %999 = vmatprep.subr.mxu0 0.0
        %1000 = vmatpush2.msra.mxu0 0.0
        %1001 = vmatprep.subr.mxu0 0.0
        %1002 = vmatpush2.msra.mxu0 0.0
        %1003 = vmatprep.mubr.f32.mxu0 0.0
        %1004 = vmatmul.mubr.f32.gmra.mxu0 %v937
        %v1005 = vpop.f32.mrf.mxu0
        %v1006 = vadd.f32 %v934, %v1005
        %v1007 = vpop.f32.mrf.mxu0
        %v1008 = vadd.f32 %v934, %v1007
        %1009 = vdwg.mxu0
        %v1010 = vmax.f32 %v1006, 0.0
        %v1011 = vmax.f32 %v1008, 0.0
        %v1012 = vld [vmem:[%s6] sm:$0xf]
        %v1013 = vld [vmem:[%s12] sm:$0xf]
        %1015 = vset.pattern.permute.xlu0 0
        %1016 = vperm.xlu0 %1015, %v1013
        %v1017 = vpop.permute.xlu0 %1016
        %vm1019 = vcmask 64512
        %v1021 = vsel %vm1019, %v1012, 0
        %1023 = vmatprep.subr.mxu0 0.0
        %1024 = vmatpush1.msra.mxu0 0.0
        %1025 = vmatprep.subr.mxu0 0.0
        %1026 = vmatpush1.msra.mxu0 0.0
        %1027 = vmatprep.subr.mxu0 0.0
        %1028 = vmatpush1.msra.mxu0 0.0
        %1029 = vmatprep.subr.mxu0 0.0
        %1030 = vmatpush1.msra.mxu0 0.0
        %1031 = vmatprep.subr.mxu0 0.0
        %1032 = vmatpush1.msra.mxu0 0.0
        %1033 = vmatprep.subr.mxu0 0.0
        %1034 = vmatpush1.msra.mxu0 0.0
        %1035 = vmatprep.subr.mxu0 0.0
        %1036 = vmatpush1.msra.mxu0 0.0
        %1037 = vmatprep.subr.mxu0 0.0
        %1038 = vmatpush1.msra.mxu0 0.0
        %1039 = vmatprep.subr.mxu0 0.0
        %1040 = vmatpush1.msra.mxu0 0.0
        %1041 = vmatprep.subr.mxu0 0.0
        %1042 = vmatpush1.msra.mxu0 0.0
        %1043 = vmatprep.subr.mxu0 0.0
        %1044 = vmatpush1.msra.mxu0 0.0
        %1045 = vmatprep.subr.mxu0 0.0
        %1046 = vmatpush1.msra.mxu0 0.0
        %1047 = vmatprep.subr.mxu0 0.0
        %1048 = vmatpush1.msra.mxu0 0.0
        %1049 = vmatprep.subr.mxu0 0.0
        %1050 = vmatpush1.msra.mxu0 0.0
        %1051 = vmatprep.subr.mxu0 0.0
        %1052 = vmatpush1.msra.mxu0 0.0
        %1053 = vmatprep.subr.mxu0 %v1011
        %1054 = vmatpush1.msra.mxu0 %v1010
        %1055 = vmatprep.subr.mxu0 0.0
        %1056 = vmatpush2.msra.mxu0 0.0
        %1057 = vmatprep.subr.mxu0 0.0
        %1058 = vmatpush2.msra.mxu0 0.0
        %1059 = vmatprep.subr.mxu0 0.0
        %1060 = vmatpush2.msra.mxu0 0.0
        %1061 = vmatprep.subr.mxu0 0.0
        %1062 = vmatpush2.msra.mxu0 0.0
        %1063 = vmatprep.subr.mxu0 0.0
        %1064 = vmatpush2.msra.mxu0 0.0
        %1065 = vmatprep.subr.mxu0 0.0
        %1066 = vmatpush2.msra.mxu0 0.0
        %1067 = vmatprep.subr.mxu0 0.0
        %1068 = vmatpush2.msra.mxu0 0.0
        %1069 = vmatprep.subr.mxu0 0.0
        %1070 = vmatpush2.msra.mxu0 0.0
        %1071 = vmatprep.subr.mxu0 0.0
        %1072 = vmatpush2.msra.mxu0 0.0
        %1073 = vmatprep.subr.mxu0 0.0
        %1074 = vmatpush2.msra.mxu0 0.0
        %1075 = vmatprep.subr.mxu0 0.0
        %1076 = vmatpush2.msra.mxu0 0.0
        %1077 = vmatprep.subr.mxu0 0.0
        %1078 = vmatpush2.msra.mxu0 0.0
        %1079 = vmatprep.subr.mxu0 0.0
        %1080 = vmatpush2.msra.mxu0 0.0
        %1081 = vmatprep.subr.mxu0 0.0
        %1082 = vmatpush2.msra.mxu0 0.0
        %1083 = vmatprep.subr.mxu0 0.0
        %1084 = vmatpush2.msra.mxu0 0.0
        %1085 = vmatprep.subr.mxu0 0.0
        %1086 = vmatpush2.msra.mxu0 0.0
        %1087 = vmatprep.mubr.f32.mxu0 0.0
        %1088 = vmatmul.mubr.f32.gmra.mxu0 %v1021
        %v1089 = vpop.f32.mrf.mxu0
        %v1090 = vadd.f32 %v1017, %v1089
        %v1091 = vpop.f32.mrf.mxu0
        %v1092 = vadd.f32 %v1017, %v1091
        %1093 = vdwg.mxu0
        %v1096 = vcombine.low %v1090, %v1092
        %1098 = vst [vmem:[%s434] sm:$0xff] %v1096
        %s1099 = sand.u32 %s313, 1
        %s1100 = scalar_lea.sflag [#allocation3], %s1099
        %s1101 = sand.u32 %s313, 1
        %s1102 = smul.addr %s1101, 8
        %s1103 = scalar_lea.vmem [#allocation2], %s1102
        // Predicated region
        $region73: #{tpu_custom_call.1} parent=71 // pred_check
          %p1104 = pneg %p323
        $region74: #{tpu_custom_call.1} parent=71 // pred_check_branch
          %1106 = sbr.rel (%p1104) target = $region76
        $region75: #{tpu_custom_call.1} parent=71 // pred_region
          %s1107 = smul.u32 2, %s27
          %s1109 = ssub.s32 128, 128
          %1110 = vsyncadd %s1100, %s1109
          %s1111 = smul.addr %s1107, 64
          %s1112 = scalar_lea.hbm %s13, %s1111
          %s1114 = sshll.u32 %s1103, 4
          %s1115 = int_to_ptr.vmem [resolvable:$true] %s1114
          %1117 = dma.vmem_to_hbm [thread:$0]  %s1115, 128, %s1112, %s1100
        $region76: #{tpu_custom_call.1} parent=71 // pred_fallthru
          _
      $region72: #{tpu_custom_call.1} parent=5 // pred_fallthru
        _
      %p1118 = scmp.le.s32.totalorder 2, %s22
      // Predicated region
      $region77: #{tpu_custom_call.1} parent=5 // pred_check
        %p1119 = pneg %p1118
      $region78: #{tpu_custom_call.1} parent=5 // pred_check_branch
        %1121 = sbr.rel (%p1119) target = $region80
      $region79: #{tpu_custom_call.1} parent=5 // pred_region
        %s1122 = ssub.s32 %s22, 2
        // Predicated region
        $region81: #{tpu_custom_call.1} parent=79 // pred_check
          %p1123 = pneg %p329
        $region82: #{tpu_custom_call.1} parent=79 // pred_check_branch
          %1125 = sbr.rel (%p1123) target = $region84
        $region83: #{tpu_custom_call.1} parent=79 // pred_region
          %s1126 = sand.u32 %s314, 1
          %s1127 = scalar_lea.sflag [#allocation3], %s1126
          %s1128 = sand.u32 %s314, 1
          %s1129 = smul.addr %s1128, 8
          %s1130 = scalar_lea.vmem [#allocation2], %s1129
          %1131 = dma.done %s1127, 128
        $region84: #{tpu_custom_call.1} parent=79 // pred_fallthru
          _
      $region80: #{tpu_custom_call.1} parent=5 // pred_fallthru
        _
    $region6: #{tpu_custom_call.1} parent=1 // loop_footer
      %s26 = sadd.s32 1, %s22
    $region7: #{tpu_custom_call.1} parent=1 // loop_footer_branch
      %21 = sbr.rel target = $region3
    $region8: #{tpu_custom_call.1} parent=1 // loop_exit
      _
    %1132 = vsyncpa [#allocation3], 1
    %s1133 = scalar_lea.sflag [#allocation3], 1
    %1134 = vsyncpa %s1133, 1

</llo_original>
